<compile_context>
chip_gen: v7x
topology: tpu7x:2x2x1
jax: 0.10.0
libtpu: 0.0.40
codegen_flags: <defaults>
</compile_context>

<pallas_src>
import functools

import jax
import jax.numpy as jnp
from jax import lax
from jax.experimental import pallas as pl
from jax.experimental.pallas import tpu as pltpu

# ---- config.LOSS substitutes (PIDNet defaults) -------------------------------
BALANCE_WEIGHTS = [0.4, 1.0]
SB_WEIGHTS = 1.0

# ---- OhemCrossEntropy hyper-parameters ---------------------------------------
IGNORE_LABEL = -1
THRES = 0.7
MIN_KEPT = max(1, 100000)
# NOTE: weight=None in the reference module, so no per-class weighting needed.

MAX_TILE_P = 32768  # pixels (lanes) per grid step; multiple of 128


def _pick_tile(hw, max_tile_p=MAX_TILE_P):
    """Largest lane tile <= hw that is a multiple of 128 (or hw itself if tiny)."""
    if hw <= 128:
        return hw                      # equals full array dim -> legal block
    return min(max_tile_p, (hw // 128) * 128)


def _softmax_ce_core(score_ref, target_ref, *, ignore_label, hw, tile_p,
                     mask_tail, want_prob):
    """Per-pixel CE loss and (optionally) target-class softmax probability.

    score_ref : (C, TP) view of the current tile (any float dtype)
    target_ref: (1, TP) i32
    Returns (loss, prob) each (1, TP) f32; prob is None when want_prob=False.
    Ignored / out-of-range pixels get loss = 0 and prob = +inf.
    """
    x = score_ref[...].astype(jnp.float32)              # (C, TP)
    t = target_ref[...]                                  # (1, TP)

    valid = t != ignore_label                            # (1, TP) bool
    if mask_tail:
        # Ragged last block: lanes >= HW are out of range -> treat as ignored.
        lane = lax.broadcasted_iota(jnp.int32, t.shape, 1)
        lane = lane + pl.program_id(0) * tile_p
        valid = valid & (lane < hw)

    m = jnp.max(x, axis=0, keepdims=True)                # (1, TP)
    e = jnp.exp(x - m)                                    # (C, TP)
    s = jnp.sum(e, axis=0, keepdims=True)                 # (1, TP)
    lse = m + jnp.log(s)                                  # logsumexp

    t0 = jnp.where(valid, t, 0)                           # ignore -> class 0
    # one-hot gather of the target logit via iota compare (no xlane gather)
    cls = lax.broadcasted_iota(jnp.int32, x.shape, 0)     # (C, TP)
    onehot = cls == t0                                     # (C, TP)
    x_t = jnp.sum(jnp.where(onehot, x, 0.0), axis=0, keepdims=True)

    nll = lse - x_t                                        # reduction='none' CE
    loss = jnp.where(valid, nll, 0.0)

    if not want_prob:
        return loss, None

    # softmax prob of the target class: exp(x_t - lse) == exp(-nll)
    prob = jnp.where(valid, jnp.exp(-nll), jnp.inf)
    return loss, prob


def _ce_loss_kernel(score_ref, target_ref, loss_ref, *, ignore_label, hw,
                    tile_p, mask_tail):
    """CE-map head: loss only (no prob computation or writeback)."""
    loss, _ = _softmax_ce_core(score_ref, target_ref, ignore_label=ignore_label,
                               hw=hw, tile_p=tile_p, mask_tail=mask_tail,
                               want_prob=False)
    loss_ref[...] = loss


def _ohem_ce_kernel(score_ref, target_ref, out_ref, *, ignore_label, hw,
                    tile_p, mask_tail):
    """OHEM head: packed (loss, prob) output block of shape (2, TP), one store."""
    loss, prob = _softmax_ce_core(score_ref, target_ref,
                                  ignore_label=ignore_label, hw=hw,
                                  tile_p=tile_p, mask_tail=mask_tail,
                                  want_prob=True)
    out_ref[...] = jnp.concatenate([loss, prob], axis=0)


def _run_kernel(score_nchw, target_nhw, *, want_prob,
                ignore_label=IGNORE_LABEL, max_tile_p=MAX_TILE_P):
    """Runs the Pallas kernel.  Returns (N, rows, HW) f32 output."""
    N, C, H, W = score_nchw.shape
    HW = H * W

    tile_p = _pick_tile(HW, max_tile_p)
    num_tiles = (HW + tile_p - 1) // tile_p
    mask_tail = (HW % tile_p) != 0

    # (N, C, H, W) -> (N, C, HW): pure reshape, keeps the input dtype (f32/bf16).
    score = score_nchw.reshape(N, C, HW)
    target = target_nhw.reshape(N, 1, HW).astype(jnp.int32)

    n_rows = 2 if want_prob else 1
    kernel = functools.partial(
        _ohem_ce_kernel if want_prob else _ce_loss_kernel,
        ignore_label=ignore_label, hw=HW, tile_p=tile_p, mask_tail=mask_tail)

    out = pl.pallas_call(
        kernel,
        out_shape=jax.ShapeDtypeStruct((N, n_rows, HW), jnp.float32),
        grid_spec=pltpu.PrefetchScalarGridSpec(
            num_scalar_prefetch=0,
            # pixel-tile axis first: the larger "parallel" axis gets split
            # across the 2 TensorCores on v7x even when N is small/odd.
            grid=(num_tiles, N),
            in_specs=[
                # N dim squeezed away; kernel sees (C, tile_p) / (1, tile_p).
                pl.BlockSpec((None, C, tile_p), lambda i, n: (n, 0, i)),
                pl.BlockSpec((None, 1, tile_p), lambda i, n: (n, 0, i)),
            ],
            out_specs=pl.BlockSpec((None, n_rows, tile_p),
                                   lambda i, n: (n, 0, i)),
        ),
        compiler_params=pltpu.CompilerParams(
            dimension_semantics=("parallel", "parallel"),
            # tile_p=32768, C=19 f32 -> ~2.4 MiB/step double-buffered (~5 MiB);
            # 32 MiB covers bigger C / the v5e 16 MiB default with headroom.
            vmem_limit_bytes=32 * 1024 * 1024,
        ),
    )(score, target)
    return out


@jax.jit
def _ce_forward(score, target):
    """nn.CrossEntropyLoss(reduction='none', ignore_index=-1): per-pixel map."""
    N, C, H, W = score.shape
    out = _run_kernel(score, target, want_prob=False)
    return out[:, 0, :].reshape(N, H, W)


@jax.jit
def _ohem_forward(score, target):
    """OHEM: keep valid pixels with target-class prob < threshold, mean loss."""
    out = _run_kernel(score, target, want_prob=True)
    loss = out[:, 0, :].reshape(-1)
    prob = out[:, 1, :].reshape(-1)     # +inf for ignored / padded pixels
    P = loss.shape[0]

    thres = jnp.float32(THRES)
    n_valid = jnp.sum((target.reshape(-1) != IGNORE_LABEL).astype(jnp.int32))
    # Pixels already below the fixed threshold (ignored ones are +inf).
    count_lt = jnp.sum((prob < thres).astype(jnp.int32))

    kk = min(MIN_KEPT + 1, P)

    def _thresh_fast(_):
        # >= MIN_KEPT+1 valid probs below THRES  =>  k-th smallest < THRES
        # =>  threshold == THRES exactly.  Skip the expensive top_k.
        return thres

    def _thresh_topk(_):
        neg_smallest, _ = lax.top_k(-prob, kk)
        smallest = -neg_smallest                  # ascending: kk smallest probs
        k = jnp.clip(jnp.minimum(jnp.int32(MIN_KEPT), n_valid - 1), 0, kk - 1)
        return jnp.maximum(smallest[k], thres)

    threshold = lax.cond(count_lt >= jnp.int32(MIN_KEPT + 1),
                         _thresh_fast, _thresh_topk, None)

    # prob == +inf for ignored pixels, so `keep` already excludes them.
    keep = prob < threshold
    kept_count = jnp.sum(keep.astype(jnp.float32))
    kept_loss = jnp.sum(jnp.where(keep, loss, 0.0))
    # Guard the no-valid-pixel / nothing-kept case (0/0) -> 0.0.
    return jnp.where(kept_count > 0.0,
                     kept_loss / jnp.maximum(kept_count, 1.0),
                     jnp.float32(0.0))


def ohem_cross_entropy_forward(score, target):
    """Mirrors OhemCrossEntropy.forward (config.LOSS values defined above)."""
    if not isinstance(score, (list, tuple)):
        score = [score]
    if len(BALANCE_WEIGHTS) == len(score):
        functions = [_ce_forward] * (len(BALANCE_WEIGHTS) - 1) + [_ohem_forward]
        # Matches the PyTorch semantics: per-pixel CE map(s) + scalar OHEM loss,
        # summed with broadcasting -> result has shape (N, H, W).
        return sum(w * f(x, target)
                   for w, x, f in zip(BALANCE_WEIGHTS, score, functions))
    elif len(score) == 1:
        return SB_WEIGHTS * _ohem_forward(score[0], target)
    else:
        raise ValueError("lengths of prediction and target are not identical!")


# ------------------------------ pure-JAX reference ----------------------------
def _ref_ce_map(score, target):
    x = score.astype(jnp.float32)
    logp = jax.nn.log_softmax(x, axis=1)
    valid = target != IGNORE_LABEL
    t0 = jnp.where(valid, target, 0)
    ll = jnp.take_along_axis(logp, t0[:, None], axis=1)[:, 0]
    return jnp.where(valid, -ll, 0.0)


def _ref_ohem(score, target):
    loss = _ref_ce_map(score, target).reshape(-1)
    x = score.astype(jnp.float32)
    pred = jax.nn.softmax(x, axis=1)
    valid = (target != IGNORE_LABEL)
    t0 = jnp.where(valid, target, 0)
    p_t = jnp.take_along_axis(pred, t0[:, None], axis=1)[:, 0].reshape(-1)
    valid = valid.reshape(-1)
    probs_sorted = jnp.sort(jnp.where(valid, p_t, jnp.inf))
    n_valid = int(jnp.sum(valid))
    k = min(MIN_KEPT, n_valid - 1)
    threshold = jnp.maximum(probs_sorted[k], jnp.float32(THRES))
    keep = valid & (p_t < threshold)
    return jnp.sum(jnp.where(keep, loss, 0.0)) / jnp.maximum(
        jnp.sum(keep.astype(jnp.float32)), 1.0)


if __name__ == "__main__":
    key = jax.random.PRNGKey(0)
    N, C, H, W = 2, 19, 16, 16  # small PIDNet-like shapes (19 classes)

    k1, k2, k3, k4, k5 = jax.random.split(key, 5)
    score0 = jax.random.normal(k1, (N, C, H, W), dtype=jnp.float32)
    score1 = jax.random.normal(k2, (N, C, H, W), dtype=jnp.float32)
    # targets in [0, C) with some pixels set to ignore_label (-1)
    target = jax.random.randint(k3, (N, H, W), minval=-1, maxval=C,
                                dtype=jnp.int32)

    # two-head case: CE map on head 0, OHEM scalar on head 1
    out = ohem_cross_entropy_forward([score0, score1], target)
    out = jax.block_until_ready(out)

    # single-head case: sb_weights * OHEM
    out_single = ohem_cross_entropy_forward(score1, target)
    out_single = jax.block_until_ready(out_single)

    assert out.shape == (N, H, W)
    assert out_single.shape == ()
    assert bool(jnp.isfinite(out).all())
    assert bool(jnp.isfinite(out_single))

    # correctness vs. pure-JAX reference
    ce_ref = _ref_ce_map(score0, target)
    ce_ker = _ce_forward(score0, target)
    assert bool(jnp.allclose(ce_ker, ce_ref, atol=1e-4, rtol=1e-4))
    ohem_ref = _ref_ohem(score1, target)
    assert bool(jnp.allclose(out_single, SB_WEIGHTS * ohem_ref,
                             atol=1e-4, rtol=1e-4))

    # ragged (HW not a multiple of the lane tile) + bf16 logits path
    Hr, Wr = 15, 17
    score_r = jax.random.normal(k4, (1, C, Hr, Wr), dtype=jnp.bfloat16)
    target_r = jax.random.randint(k5, (1, Hr, Wr), minval=-1, maxval=C,
                                  dtype=jnp.int32)
    out_r = jax.block_until_ready(ohem_cross_entropy_forward(score_r, target_r))
    assert out_r.shape == ()
    assert bool(jnp.isfinite(out_r))
    ohem_r_ref = _ref_ohem(score_r, target_r)
    assert bool(jnp.allclose(out_r, SB_WEIGHTS * ohem_r_ref,
                             atol=1e-3, rtol=1e-3))

    print("KERNEL_OK")
</pallas_src>

<mosaic_0001>
module attributes {stable_mosaic.version = 11 : i64} {
  func.func @_ce_loss_kernel(%arg0: i32, %arg1: i32, %arg2: memref<1x19x256xf32, #tpu.memory_space<vmem>>, %arg3: memref<1x1x256xi32, #tpu.memory_space<vmem>>, %arg4: memref<1x1x256xf32, #tpu.memory_space<vmem>>) attributes {dimension_semantics = [#tpu.dimension_semantics<parallel>, #tpu.dimension_semantics<parallel>], iteration_bounds = array<i64: 1, 2>, scalar_prefetch = 0 : i64, scratch_operands = 0 : i64, tpu.core_type = #tpu.core_type<tc>, window_params = [{transform_indices = @transform_0, window_bounds = array<i64: 1, 19, 256>}, {transform_indices = @transform_1, window_bounds = array<i64: 1, 1, 256>}, {transform_indices = @transform_2, window_bounds = array<i64: 1, 1, 256>}]} {
    %c0 = arith.constant 0 : index
    %c0_0 = arith.constant 0 : index
    %c0_1 = arith.constant 0 : index
    %0 = vector.load %arg2[%c0, %c0_0, %c0_1] : memref<1x19x256xf32, #tpu.memory_space<vmem>>, vector<1x19x256xf32>
    %1 = vector.shape_cast %0 : vector<1x19x256xf32> to vector<19x256xf32>
    %c0_2 = arith.constant 0 : index
    %c0_3 = arith.constant 0 : index
    %c0_4 = arith.constant 0 : index
    %2 = vector.load %arg3[%c0_2, %c0_3, %c0_4] : memref<1x1x256xi32, #tpu.memory_space<vmem>>, vector<1x1x256xi32>
    %3 = vector.shape_cast %2 : vector<1x1x256xi32> to vector<1x256xi32>
    %c-1_i32 = arith.constant -1 : i32
    %4 = vector.broadcast %c-1_i32 : i32 to vector<1x256xi32>
    %5 = arith.cmpi ne, %3, %4 : vector<1x256xi32>
    %cst = arith.constant dense<0xFF800000> : vector<256xf32>
    %6 = vector.multi_reduction <maximumf>, %1, %cst [0] : vector<19x256xf32> to vector<256xf32>
    %7 = vector.shape_cast %6 : vector<256xf32> to vector<1x256xf32>
    %8 = vector.broadcast %7 : vector<1x256xf32> to vector<19x256xf32>
    %9 = arith.subf %1, %8 : vector<19x256xf32>
    %10 = math.exp %9 : vector<19x256xf32>
    %cst_5 = arith.constant dense<0.000000e+00> : vector<256xf32>
    %11 = vector.multi_reduction <add>, %10, %cst_5 [0] : vector<19x256xf32> to vector<256xf32>
    %12 = vector.shape_cast %11 : vector<256xf32> to vector<1x256xf32>
    %13 = math.log %12 : vector<1x256xf32>
    %14 = arith.addf %7, %13 : vector<1x256xf32>
    %c0_i32 = arith.constant 0 : i32
    %15 = vector.broadcast %c0_i32 : i32 to vector<1x256xi32>
    %16 = arith.select %5, %3, %15 : vector<1x256xi1>, vector<1x256xi32>
    %17 = tpu.iota {dimensions = array<i32: 0>} : vector<19x256xi32>
    %18 = vector.broadcast %16 : vector<1x256xi32> to vector<19x256xi32>
    %19 = arith.cmpi eq, %17, %18 : vector<19x256xi32>
    %cst_6 = arith.constant 0.000000e+00 : f32
    %20 = vector.broadcast %cst_6 : f32 to vector<19x256xf32>
    %21 = arith.select %19, %1, %20 : vector<19x256xi1>, vector<19x256xf32>
    %cst_7 = arith.constant dense<0.000000e+00> : vector<256xf32>
    %22 = vector.multi_reduction <add>, %21, %cst_7 [0] : vector<19x256xf32> to vector<256xf32>
    %23 = vector.shape_cast %22 : vector<256xf32> to vector<1x256xf32>
    %24 = arith.subf %14, %23 : vector<1x256xf32>
    %cst_8 = arith.constant 0.000000e+00 : f32
    %25 = vector.broadcast %cst_8 : f32 to vector<1x256xf32>
    %26 = arith.select %5, %24, %25 : vector<1x256xi1>, vector<1x256xf32>
    %c0_9 = arith.constant 0 : index
    %c0_10 = arith.constant 0 : index
    %c0_11 = arith.constant 0 : index
    %27 = vector.load %arg4[%c0_9, %c0_10, %c0_11] : memref<1x1x256xf32, #tpu.memory_space<vmem>>, vector<1x1x256xf32>
    %28 = vector.shape_cast %27 : vector<1x1x256xf32> to vector<1x256xf32>
    %29 = vector.shape_cast %26 : vector<1x256xf32> to vector<1x1x256xf32>
    tpu.vector_store %arg4[%c0_9, %c0_10, %c0_11], %29 {strides = array<i32>} : memref<1x1x256xf32, #tpu.memory_space<vmem>>, vector<1x1x256xf32>,
    return
  }
  func.func @transform_0(%arg0: i32, %arg1: i32) -> (i32, i32, i32) {
    %c0_i32 = arith.constant 0 : i32
    %c0_i32_0 = arith.constant 0 : i32
    return %arg1, %c0_i32, %arg0 : i32, i32, i32
  }
  func.func @transform_1(%arg0: i32, %arg1: i32) -> (i32, i32, i32) {
    %c0_i32 = arith.constant 0 : i32
    %c0_i32_0 = arith.constant 0 : i32
    return %arg1, %c0_i32, %arg0 : i32, i32, i32
  }
  func.func @transform_2(%arg0: i32, %arg1: i32) -> (i32, i32, i32) {
    %c0_i32 = arith.constant 0 : i32
    %c0_i32_0 = arith.constant 0 : i32
    return %arg1, %c0_i32, %arg0 : i32, i32, i32
  }
}

</mosaic_0001>

<llo_original>
// kernel: squeeze.1
$region0: #{squeeze.1}
  %s0 = inlined_call_operand.vmem [shape: f32[2,256], index: 0, kind: input, shape index: {}]
  %s1 = inlined_call_operand.hbm [shape: f32[2,16,16], index: 1, kind: output, shape index: {}]
  $region1: #{squeeze.1} parent=0
    #allocation0 [shape = 'u8[16384]{0}', space=vmem, size = 0x4000, scoped, tag = 'operand span for operand 1']
    #allocation1 [shape = 's32[1]{0}', space=sflag, size = 0x4, scoped, tag = 'scoped memory for squeeze.1']
    #allocation2 [shape = 'u8[8192]{0}', space=vmem, size = 0x2000, scoped, tag = 'scoped mem for input reshape']
    %2 = vsyncpa [#allocation1], 0
    %s4 = sshllo.u32 0, 2
    %s5 = scalar_lea.vmem %s0, 2
    %v6 = vld [vmem:[%s5] sm:%s4]
    %s7 = scalar_lea.vmem [#allocation2], 8
    %8 = vst [vmem:[%s7] sm:%s4] %v6
    %v9 = vld [vmem:[%s0] sm:%s4]
    %10 = vst [vmem:[#allocation2] sm:%s4] %v9
    %v11 = vld [vmem:[#allocation2] sm:$0x3]
    %vm12 = vcmask 130048
    %13 = vst.msk [vmem:[#allocation0] ss:$16 sm:$0x3] %vm12, %v11
    %s14 = scalar_lea.vmem [#allocation2], 8
    %v15 = vld [vmem:[%s14] sm:$0x3]
    %vm16 = vcmask 130048
    %s17 = scalar_lea.vmem [#allocation0], 8
    %18 = vst.msk [vmem:[%s17] ss:$16 sm:$0x3] %vm16, %v15
    %v19 = vld.sshfl [vmem:[#allocation2] sm:$0xff pattern:$0x99999180]
    %20 = vrot.lane.b32.xlu0 %v19, 112
    %v21 = vpop.permute.xlu0 %20
    %vm22 = vcmask 130048
    %s23 = scalar_lea.vmem [#allocation0], 1
    %24 = vst.msk [vmem:[%s23] ss:$8 sm:$0xf] %vm22, %v21
    %v25 = vld.sshfl [vmem:[#allocation2] sm:$0xff pattern:$0x99999180]
    %26 = vrot.lane.b32.xlu0 %v25, 96
    %v27 = vpop.permute.xlu0 %26
    %vm28 = vcmask 130048
    %s29 = scalar_lea.vmem [#allocation0], 2
    %30 = vst.msk [vmem:[%s29] ss:$8 sm:$0xf] %vm28, %v27
    %v31 = vld.sshfl [vmem:[#allocation2] sm:$0xff pattern:$0x99999180]
    %32 = vrot.lane.b32.xlu0 %v31, 80
    %v33 = vpop.permute.xlu0 %32
    %vm34 = vcmask 130048
    %s35 = scalar_lea.vmem [#allocation0], 3
    %36 = vst.msk [vmem:[%s35] ss:$8 sm:$0xf] %vm34, %v33
    %v37 = vld.sshfl [vmem:[#allocation2] sm:$0xff pattern:$0x99999180]
    %38 = vrot.lane.b32.xlu0 %v37, 64
    %v39 = vpop.permute.xlu0 %38
    %vm40 = vcmask 130048
    %s41 = scalar_lea.vmem [#allocation0], 4
    %42 = vst.msk [vmem:[%s41] ss:$8 sm:$0xf] %vm40, %v39
    %v43 = vld.sshfl [vmem:[#allocation2] sm:$0xff pattern:$0x99999180]
    %44 = vrot.lane.b32.xlu0 %v43, 48
    %v45 = vpop.permute.xlu0 %44
    %vm46 = vcmask 130048
    %s47 = scalar_lea.vmem [#allocation0], 5
    %48 = vst.msk [vmem:[%s47] ss:$8 sm:$0xf] %vm46, %v45
    %v49 = vld.sshfl [vmem:[#allocation2] sm:$0xff pattern:$0x99999180]
    %50 = vrot.lane.b32.xlu0 %v49, 32
    %v51 = vpop.permute.xlu0 %50
    %vm52 = vcmask 130048
    %s53 = scalar_lea.vmem [#allocation0], 6
    %54 = vst.msk [vmem:[%s53] ss:$8 sm:$0xf] %vm52, %v51
    %v55 = vld.sshfl [vmem:[#allocation2] sm:$0xff pattern:$0x99999180]
    %56 = vrot.lane.b32.xlu0 %v55, 16
    %v57 = vpop.permute.xlu0 %56
    %vm58 = vcmask 130048
    %s59 = scalar_lea.vmem [#allocation0], 7
    %60 = vst.msk [vmem:[%s59] ss:$8 sm:$0xf] %vm58, %v57
    %s62 = ssub.s32 512, 512
    %63 = vsyncadd [#allocation1], %s62
    %s65 = sshll.u32 [#allocation0], 4
    %s66 = int_to_ptr.vmem [resolvable:$true] %s65
    %68 = dma.vmem_to_hbm [thread:$0]  %s66, 512, %s1, [#allocation1]
    %69 = dma.done [#allocation1], 512
    %70 = vsyncpa [#allocation1], 1

// kernel: _ce_forward.1
$region0: #{_ce_forward.1}
  #allocation0 [shape = 'u32[]', space=smem, size = 0x4, offset = 0x4, fixed_abs, tag = 'smem constant byte address 0x4 - core index']
  #allocation1 [shape = 'u32[144,128]{1,0:T(1,128)}', space=vmem, size = 0x12000, scoped, tag = 'internal scratch']
  %s0 = inlined_call_operand.vmem [shape: f32[2,19,256], index: 0, kind: input, shape index: {}]
  %s1 = inlined_call_operand.vmem [shape: s32[2,1,256], index: 1, kind: input, shape index: {}]
  %s2 = inlined_call_operand.vmem [shape: f32[2,1,256], index: 2, kind: output, shape index: {}]
  %s3 = sld [smem:[#allocation0]]
  $region41: #{_ce_forward.1} parent=0
    _
  %s5 = ssub.s32 1, %s3
  %s6 = scalar_select 0, %s5, %s3
  loop: start=0, step=1, limit=4
  $region2: #{_ce_forward.1} parent=0 // loop_pre_header
    _
  $region3: #{_ce_forward.1} parent=0 // loop_header
    %s8 = sphi 0, %s12
    %p9 = scmp.ge.s32.totalorder %s8, 4
    %s15 = sphi 0, %s27
    %s16 = sphi 0, %s23
    %s17 = sphi 0, %s15
    %s18 = sphi 0, %s16
    %s19 = sphi 0, %s17
    %s20 = sphi 0, %s18
    %s32 = sphi 0, %s34
    %s35 = sphi 0, %s32
    %s36 = sphi 0, %s35
    %s52 = sphi 0, %s36
    %s60 = sphi 0, %s62
    %s63 = sphi 0, %s60
    %s64 = sphi 0, %s63
    %s80 = sphi 0, %s64
    %s88 = sphi 0, %s90
    %s91 = sphi 0, %s88
    %s92 = sphi 0, %s91
    %s108 = sphi 0, %s92
  $region4: #{_ce_forward.1} parent=0 // loop_header_branch
    %11 = sbr.rel (%p9) target = $region8
  $region5: #{_ce_forward.1} parent=0 // loop_body
    %s13 = ssub.s32 %s8, 1
    %s14 = ssub.s32 %s8, 2
    %s21 = sadd.s32 1, %s16
    %p22 = scmp.ge.s32.totalorder %s21, 2
    %s23 = scalar_select %p22, 0, %s21
    %s24 = sadd.s32 1, %s15
    %s25 = scalar_select %p22, %s24, %s15
    %p26 = scmp.ge.s32.totalorder %s25, 1
    %s27 = scalar_select %p26, 0, %s25
    %s28 = ssub.s32 %s16, %s23
    %s29 = ssub.s32 %s15, %s27
    %s30 = sor.u32 %s28, %s29
    %p31 = scmp.eq.s32.totalorder %s30, 0
    %s33 = sadd.s32 %s32, 1
    %s34 = scalar_select %p31, %s32, %s33
    %p37 = pneg %p31
    %p38 = scmp.eq.s32.totalorder %s8, 1
    %p39 = por %p37, %p38
    %p40 = scmp.ne.s32.totalorder %s32, %s35
    %p41 = scmp.eq.s32.totalorder %s8, 0
    %p42 = por %p40, %p41
    %p43 = scmp.ne.s32.totalorder %s32, %s35
    %p44 = scmp.eq.s32.totalorder %s13, 1
    %p45 = por %p43, %p44
    %p46 = scmp.ne.s32.totalorder %s35, %s36
    %p47 = scmp.eq.s32.totalorder %s13, 0
    %p48 = por %p46, %p47
    %p49 = scmp.ne.s32.totalorder %s35, %s36
    %p50 = scmp.eq.s32.totalorder %s14, 1
    %p51 = por %p49, %p50
    %p53 = scmp.ne.s32.totalorder %s36, %s52
    %p54 = scmp.eq.s32.totalorder %s14, 0
    %p55 = por %p53, %p54
    %s56 = ssub.s32 %s16, %s23
    %s57 = ssub.s32 %s15, %s27
    %s58 = sor.u32 %s56, %s57
    %p59 = scmp.eq.s32.totalorder %s58, 0
    %s61 = sadd.s32 %s60, 1
    %s62 = scalar_select %p59, %s60, %s61
    %p65 = pneg %p59
    %p66 = scmp.eq.s32.totalorder %s8, 1
    %p67 = por %p65, %p66
    %p68 = scmp.ne.s32.totalorder %s60, %s63
    %p69 = scmp.eq.s32.totalorder %s8, 0
    %p70 = por %p68, %p69
    %p71 = scmp.ne.s32.totalorder %s60, %s63
    %p72 = scmp.eq.s32.totalorder %s13, 1
    %p73 = por %p71, %p72
    %p74 = scmp.ne.s32.totalorder %s63, %s64
    %p75 = scmp.eq.s32.totalorder %s13, 0
    %p76 = por %p74, %p75
    %p77 = scmp.ne.s32.totalorder %s63, %s64
    %p78 = scmp.eq.s32.totalorder %s14, 1
    %p79 = por %p77, %p78
    %p81 = scmp.ne.s32.totalorder %s64, %s80
    %p82 = scmp.eq.s32.totalorder %s14, 0
    %p83 = por %p81, %p82
    %s84 = ssub.s32 %s16, %s23
    %s85 = ssub.s32 %s15, %s27
    %s86 = sor.u32 %s84, %s85
    %p87 = scmp.eq.s32.totalorder %s86, 0
    %s89 = sadd.s32 %s88, 1
    %s90 = scalar_select %p87, %s88, %s89
    %p93 = pneg %p87
    %p94 = scmp.eq.s32.totalorder %s8, 1
    %p95 = por %p93, %p94
    %p96 = scmp.ne.s32.totalorder %s88, %s91
    %p97 = scmp.eq.s32.totalorder %s8, 0
    %p98 = por %p96, %p97
    %p99 = scmp.ne.s32.totalorder %s88, %s91
    %p100 = scmp.eq.s32.totalorder %s13, 1
    %p101 = por %p99, %p100
    %p102 = scmp.ne.s32.totalorder %s91, %s92
    %p103 = scmp.eq.s32.totalorder %s13, 0
    %p104 = por %p102, %p103
    %p105 = scmp.ne.s32.totalorder %s91, %s92
    %p106 = scmp.eq.s32.totalorder %s14, 1
    %p107 = por %p105, %p106
    %p109 = scmp.ne.s32.totalorder %s92, %s108
    %p110 = scmp.eq.s32.totalorder %s14, 0
    %p111 = por %p109, %p110
    %p112 = scmp.le.s32.totalorder 1, %s8
    %p113 = scmp.lt.s32.totalorder %s8, 3
    %p114 = pnand %p112, %p113
    %p115 = pneg %p114
    // Predicated region
    $region9: #{_ce_forward.1} parent=5 // pred_check
      _
    $region10: #{_ce_forward.1} parent=5 // pred_check_branch
      %117 = sbr.rel (%p114) target = $region12
    $region11: #{_ce_forward.1} parent=5 // pred_region
      %s118 = ssub.s32 %s8, 1
    $region12: #{_ce_forward.1} parent=5 // pred_fallthru
      _
    %p119 = scmp.lt.s32.totalorder %s8, 2
    // Predicated region
    $region13: #{_ce_forward.1} parent=5 // pred_check
      %p120 = pneg %p119
    $region14: #{_ce_forward.1} parent=5 // pred_check_branch
      %122 = sbr.rel (%p120) target = $region16
    $region15: #{_ce_forward.1} parent=5 // pred_region
      // Predicated region
      $region17: #{_ce_forward.1} parent=15 // pred_check
        %p123 = pneg %p42
      $region18: #{_ce_forward.1} parent=15 // pred_check_branch
        %125 = sbr.rel (%p123) target = $region20
      $region19: #{_ce_forward.1} parent=15 // pred_region
        %s126 = smul.u32 2, %s15
        %p127 = scmp.lt.s32.totalorder %s16, 1
        %s128 = scalar_select %p127, %s16, 1
        %p129 = scmp.lt.s32.totalorder %s126, 1
        %s130 = scalar_select %p129, %s126, 1
        %s131 = smul.addr %s128, 6
        %s132 = sadd.s32 %s130, %s131
        %s133 = smul.addr %s132, 8
        %s134 = scalar_lea.vmem %s0, %s133
        %s135 = smul.u32 2, %s15
      $region20: #{_ce_forward.1} parent=15 // pred_fallthru
        _
      // Predicated region
      $region21: #{_ce_forward.1} parent=15 // pred_check
        %p136 = pneg %p70
      $region22: #{_ce_forward.1} parent=15 // pred_check_branch
        %138 = sbr.rel (%p136) target = $region24
      $region23: #{_ce_forward.1} parent=15 // pred_region
        %s139 = smul.u32 2, %s15
        %p140 = scmp.lt.s32.totalorder %s16, 1
        %s141 = scalar_select %p140, %s16, 1
        %p142 = scmp.lt.s32.totalorder %s139, 1
        %s143 = scalar_select %p142, %s139, 1
        %s144 = smul.addr %s141, 2
        %s145 = sadd.s32 %s143, %s144
        %s146 = scalar_lea.vmem %s1, %s145
        %s147 = smul.u32 2, %s15
      $region24: #{_ce_forward.1} parent=15 // pred_fallthru
        _
    $region16: #{_ce_forward.1} parent=5 // pred_fallthru
      _
    %p148 = scmp.le.s32.totalorder 1, %s8
    %p149 = scmp.lt.s32.totalorder %s8, 3
    %p150 = pnand %p148, %p149
    %p151 = pneg %p150
    // Predicated region
    $region25: #{_ce_forward.1} parent=5 // pred_check
      _
    $region26: #{_ce_forward.1} parent=5 // pred_check_branch
      %153 = sbr.rel (%p150) target = $region28
    $region27: #{_ce_forward.1} parent=5 // pred_region
      %s154 = ssub.s32 %s8, 1
      %s155 = smul.u32 2, %s17
      %p156 = scmp.lt.s32.totalorder %s18, 1
      %s157 = scalar_select %p156, %s18, 1
      %p158 = scmp.lt.s32.totalorder %s155, 1
      %s159 = scalar_select %p158, %s155, 1
      %s160 = smul.addr %s157, 6
      %s161 = sadd.s32 %s159, %s160
      %s162 = smul.addr %s161, 8
      %s163 = scalar_lea.vmem %s0, %s162
      %p164 = pneg %p48
      %p165 = pneg %p45
      %s166 = smul.u32 2, %s17
      %p167 = scmp.lt.s32.totalorder %s18, 1
      %s168 = scalar_select %p167, %s18, 1
      %p169 = scmp.lt.s32.totalorder %s166, 1
      %s170 = scalar_select %p169, %s166, 1
      %s171 = smul.addr %s168, 2
      %s172 = sadd.s32 %s170, %s171
      %s173 = scalar_lea.vmem %s1, %s172
      %p174 = pneg %p76
      %p175 = pneg %p73
      %p176 = pneg %p104
      %p177 = pneg %p101
      %s178 = smul.u32 2, %s17
      %p179 = scmp.lt.s32.totalorder %s18, 1
      %s180 = scalar_select %p179, %s18, 1
      %p181 = scmp.lt.s32.totalorder %s178, 1
      %s182 = scalar_select %p181, %s178, 1
      %s183 = smul.addr %s180, 2
      %s184 = sadd.s32 %s182, %s183
      %s185 = scalar_lea.vmem %s2, %s184
      %s186 = smul.u32 2, %s17
      %p187 = scmp.lt.s32.totalorder %s18, 1
      %s188 = scalar_select %p187, %s18, 1
      %p189 = scmp.lt.s32.totalorder %s186, 1
      %s190 = scalar_select %p189, %s186, 1
      %s191 = smul.addr %s188, 6
      %s192 = sadd.s32 %s190, %s191
      %s193 = smul.addr %s192, 8
      %s194 = scalar_lea.vmem %s0, %s193
      %s195 = smul.u32 2, %s17
      %s196 = smul.u32 2, %s17
      %p197 = scmp.lt.s32.totalorder %s18, 1
      %s198 = scalar_select %p197, %s18, 1
      %p199 = scmp.lt.s32.totalorder %s196, 1
      %s200 = scalar_select %p199, %s196, 1
      %s201 = smul.addr %s198, 2
      %s202 = sadd.s32 %s200, %s201
      %s203 = scalar_lea.vmem %s1, %s202
      %s204 = smul.u32 2, %s17
      %s205 = smul.u32 2, %s17
      %p206 = scmp.lt.s32.totalorder %s18, 1
      %s207 = scalar_select %p206, %s18, 1
      %p208 = scmp.lt.s32.totalorder %s205, 1
      %s209 = scalar_select %p208, %s205, 1
      %s210 = smul.addr %s207, 2
      %s211 = sadd.s32 %s209, %s210
      %s212 = scalar_lea.vmem %s2, %s211
      %s213 = smul.u32 2, %s17
      %v214 = vld [vmem:[%s194] sm:$0xff]
      %v215 = vld [vmem:[%s194 + $0x8] sm:$0xff]
      %v216 = vld [vmem:[%s194 + $0x10] sm:$0xff]
      %v217 = vld [vmem:[%s194 + $0x18] sm:$0xff]
      %v218 = vld [vmem:[%s194 + $0x20] sm:$0x7]
      %v219 = vld [vmem:[%s194 + $0x28] sm:$0x7]
      %v220 = vld [vmem:[%s203] sm:$0x3]
      %vm221 = vcmp.ne.s32.totalorder %v220, 4294967295
      %vm222 = vcmask 1042432
      %v223 = vsel %vm222, %v218, -inf
      %v224 = vmax.f32 %v214, %v223
      %v225 = vmax.f32 %v224, %v216
      %v226 = vrot.slane %v225, 4
      %v227 = vmax.f32 %v225, %v226
      %v228 = vrot.slane %v227, 2
      %v229 = vmax.f32 %v227, %v228
      %v230 = vrot.slane %v229, 1
      %v231 = vmax.f32 %v229, %v230
      %v232 = vsel %vm222, %v219, -inf
      %v233 = vmax.f32 %v215, %v232
      %v234 = vmax.f32 %v233, %v217
      %v235 = vrot.slane %v234, 4
      %v236 = vmax.f32 %v234, %v235
      %v237 = vrot.slane %v236, 2
      %v238 = vmax.f32 %v236, %v237
      %v239 = vrot.slane %v238, 1
      %v240 = vmax.f32 %v238, %v239
      %v241 = vsub.f32 %v214, %v231
      %v242 = vsub.f32 %v215, %v240
      %v243 = vsub.f32 %v216, %v231
      %v244 = vsub.f32 %v217, %v240
      %v245 = vsub.f32 %v218, %v231
      %v246 = vsub.f32 %v219, %v240
      %v247 = vmul.f32 %v241, 1.442695
      %v248 = vpow.pop %v247
      %v249 = vmul.f32 %v242, 1.442695
      %v250 = vpow.pop %v249
      %v251 = vmul.f32 %v243, 1.442695
      %v252 = vpow.pop %v251
      %v253 = vmul.f32 %v244, 1.442695
      %v254 = vpow.pop %v253
      %v255 = vmul.f32 %v245, 1.442695
      %v256 = vpow.pop %v255
      %v257 = vmul.f32 %v246, 1.442695
      %v258 = vpow.pop %v257
      %v259 = vadd.f32 %v248, %v252
      %v260 = vsel %vm222, %v256, 0.0
      %v261 = vadd.f32 %v259, %v260
      %v262 = vrot.slane %v261, 4
      %v263 = vadd.f32 %v261, %v262
      %v264 = vrot.slane %v263, 2
      %v265 = vadd.f32 %v263, %v264
      %v266 = vrot.slane %v265, 1
      %v267 = vadd.f32 %v265, %v266
      %v268 = vadd.f32 %v250, %v254
      %v269 = vsel %vm222, %v258, 0.0
      %v270 = vadd.f32 %v268, %v269
      %v271 = vrot.slane %v270, 4
      %v272 = vadd.f32 %v270, %v271
      %v273 = vrot.slane %v272, 2
      %v274 = vadd.f32 %v272, %v273
      %v275 = vrot.slane %v274, 1
      %v276 = vadd.f32 %v274, %v275
      %v277 = vlog2.pop %v267
      %v278 = vmul.f32 %v277, 0.6931472
      %v279 = vlog2.pop %v276
      %v280 = vmul.f32 %v279, 0.6931472
      %v281 = vadd.f32 %v231, %v278
      %v282 = vadd.f32 %v240, %v280
      %v283 = vsel %vm221, %v220, 0
      %v284 = vlaneseq
      %v285 = vshrl.u32 %v284, 7
      %v286 = vadd.s32 %v285, 8
      %v287 = vadd.s32 %v285, 16
      %v288 = vlaneseq
      %v289 = vshrl.u32 %v288, 7
      %v290 = vsub.s32 0, %v289
      %v291 = vrot.slane %v283, %v290
      %v292 = vlaneseq
      %v293 = vshrl.u32 %v292, 7
      %v294 = vsub.s32 1, %v293
      %v295 = vrot.slane %v283, %v294
      %vm296 = vcmp.eq.s32.totalorder %v285, %v291
      %vm297 = vcmp.eq.s32.totalorder %v285, %v295
      %vm298 = vcmp.eq.s32.totalorder %v286, %v291
      %vm299 = vcmp.eq.s32.totalorder %v286, %v295
      %vm300 = vcmp.eq.s32.totalorder %v287, %v291
      %vm301 = vcmp.eq.s32.totalorder %v287, %v295
      %v302 = vsel %vm296, %v214, 0.0
      %v303 = vsel %vm297, %v215, 0.0
      %v304 = vsel %vm298, %v216, 0.0
      %v305 = vsel %vm299, %v217, 0.0
      %v306 = vsel %vm300, %v218, 0.0
      %v307 = vsel %vm301, %v219, 0.0
      %v308 = vadd.f32 %v302, %v304
      %v309 = vsel %vm222, %v306, 0.0
      %v310 = vadd.f32 %v308, %v309
      %v311 = vrot.slane %v310, 4
      %v312 = vadd.f32 %v310, %v311
      %v313 = vrot.slane %v312, 2
      %v314 = vadd.f32 %v312, %v313
      %v315 = vrot.slane %v314, 1
      %v316 = vadd.f32 %v314, %v315
      %v317 = vadd.f32 %v303, %v305
      %v318 = vsel %vm222, %v307, 0.0
      %v319 = vadd.f32 %v317, %v318
      %v320 = vrot.slane %v319, 4
      %v321 = vadd.f32 %v319, %v320
      %v322 = vrot.slane %v321, 2
      %v323 = vadd.f32 %v321, %v322
      %v324 = vrot.slane %v323, 1
      %v325 = vadd.f32 %v323, %v324
      %v326 = vsub.f32 %v281, %v316
      %v327 = vsub.f32 %v282, %v325
      %v330 = vcombine.low %v326, %v327
      %v332 = vunpack.c.l.s4 1966171168
      %v333 = vunpack.c.0.s8 %v332
      %v334 = vlaneseq
      %v335 = vshrl.u32 %v334, 7
      %v336 = vsub.s32 %v333, %v335
      %v337 = vrot.slane %v330, %v336
      %v339 = vunpack.c.l.s4 1966171168
      %v340 = vunpack.c.0.s8 %v339
      %v341 = vlaneseq
      %v342 = vshrl.u32 %v341, 7
      %v343 = vsub.s32 %v340, %v342
      %v344 = vrot.slane %v337, %v343
      %v346 = vsel %vm221, %v344, 0.0
      %v347 = vlaneseq
      %vm348 = vcmp.ge.s32.totalorder %v347, 0
      %vm349 = vcmp.lt.s32.totalorder %v347, 256
      %vm350 = vmand %vm348, %vm349
      %351 = vst.msk [vmem:[%s212] sm:$0x3] %vm350, %v346
      %s352 = smul.u32 2, %s17
      %p353 = scmp.lt.s32.totalorder %s18, 1
      %s354 = scalar_select %p353, %s18, 1
      %p355 = scmp.lt.s32.totalorder %s352, 1
      %s356 = scalar_select %p355, %s352, 1
      %s357 = smul.addr %s354, 2
      %s358 = sadd.s32 %s356, %s357
      %s359 = scalar_lea.vmem %s2, %s358
      // Predicated region
      $region29: #{_ce_forward.1} parent=27 // pred_check
        %p360 = pneg %p101
      $region30: #{_ce_forward.1} parent=27 // pred_check_branch
        %362 = sbr.rel (%p360) target = $region32
      $region31: #{_ce_forward.1} parent=27 // pred_region
        %s363 = smul.u32 2, %s17
      $region32: #{_ce_forward.1} parent=27 // pred_fallthru
        _
    $region28: #{_ce_forward.1} parent=5 // pred_fallthru
      _
    %p364 = scmp.le.s32.totalorder 2, %s8
    // Predicated region
    $region33: #{_ce_forward.1} parent=5 // pred_check
      %p365 = pneg %p364
    $region34: #{_ce_forward.1} parent=5 // pred_check_branch
      %367 = sbr.rel (%p365) target = $region36
    $region35: #{_ce_forward.1} parent=5 // pred_region
      %s368 = ssub.s32 %s8, 2
      // Predicated region
      $region37: #{_ce_forward.1} parent=35 // pred_check
        %p369 = pneg %p107
      $region38: #{_ce_forward.1} parent=35 // pred_check_branch
        %371 = sbr.rel (%p369) target = $region40
      $region39: #{_ce_forward.1} parent=35 // pred_region
        %s372 = smul.u32 2, %s19
        %p373 = scmp.lt.s32.totalorder %s20, 1
        %s374 = scalar_select %p373, %s20, 1
        %p375 = scmp.lt.s32.totalorder %s372, 1
        %s376 = scalar_select %p375, %s372, 1
        %s377 = smul.addr %s374, 2
        %s378 = sadd.s32 %s376, %s377
        %s379 = scalar_lea.vmem %s2, %s378
      $region40: #{_ce_forward.1} parent=35 // pred_fallthru
        _
    $region36: #{_ce_forward.1} parent=5 // pred_fallthru
      _
  $region6: #{_ce_forward.1} parent=0 // loop_footer
    %s12 = sadd.s32 1, %s8
  $region7: #{_ce_forward.1} parent=0 // loop_footer_branch
    %7 = sbr.rel target = $region3
  $region8: #{_ce_forward.1} parent=0 // loop_exit
    _

</llo_original>
